<compile_context>
chip_gen: v5e
topology: v5e:2x2
jax: 0.10.0
libtpu: 0.0.40
codegen_flags: <defaults>
</compile_context>

<pallas_src>
import functools

import jax
import jax.numpy as jnp
from jax import lax
from jax.experimental import pallas as pl
from jax.experimental.pallas import tpu as pltpu


def _round_up(x, m):
    return ((x + m - 1) // m) * m


# -----------------------------------------------------------------------------
# Kernel
# -----------------------------------------------------------------------------
def a2c_kernel(x_ref, w1_ref, b1_ref, w2_ref, b2_ref, wf_ref, bf_ref, out_ref,
               *, action_size, compute_dtype, approx_recip):
    x = x_ref[...]

    # shared: Linear(state_size, 128) + ReLU   (MXU matmul in compute_dtype, f32 accumulate)
    h1 = jnp.dot(x.astype(compute_dtype), w1_ref[...],
                 preferred_element_type=jnp.float32) + b1_ref[...]
    h1 = jnp.maximum(h1, 0.0)

    # shared: Linear(128, 128) + ReLU
    h2 = jnp.dot(h1.astype(compute_dtype), w2_ref[...],
                 preferred_element_type=jnp.float32) + b2_ref[...]
    h2 = jnp.maximum(h2, 0.0)

    # fused actor+critic head: one lane-dense 128-wide matmul.
    #   cols [0, A) -> actor logits, col A -> critic value, cols > A -> zero padding
    fused = jnp.dot(h2.astype(compute_dtype), wf_ref[...],
                    preferred_element_type=jnp.float32) + bf_ref[...]

    col = lax.broadcasted_iota(jnp.int32, fused.shape, 1)
    is_logit = col < action_size

    # masked, numerically-stable softmax over the real logits only.
    m = jnp.max(jnp.where(is_logit, fused, -jnp.inf), axis=-1, keepdims=True)
    e = jnp.exp(fused - m)
    e = jnp.where(is_logit, e, 0.0)          # post-exp mask: robust, no exp(-inf) reliance
    denom = jnp.sum(e, axis=-1, keepdims=True)
    probs = e * pl.reciprocal(denom, approx=approx_recip)

    # single unmasked lane-dense store: probs | value | zeros
    out = jnp.where(col == action_size, fused, probs)
    out_ref[...] = out.astype(out_ref.dtype)


# -----------------------------------------------------------------------------
# One-time parameter preparation (hoisted out of the per-call forward)
# -----------------------------------------------------------------------------
def prepare_params(params, *, compute_dtype=jnp.bfloat16):
    """Fuse actor+critic heads into one lane-dense (hidden, 128k) matrix and cast
    matmul operands to compute_dtype ONCE.  Cache the result alongside the params;
    bf16 is a fast path on all generations (v5e/v6e/v7x MXUs are native bf16) --
    bias/ReLU/softmax math stays in f32 inside the kernel."""
    state_size, hidden = params["w1"].shape
    action_size = params["wa"].shape[1]
    head_pad = _round_up(action_size + 1, 128)          # lane-dense head width

    wf = jnp.zeros((hidden, head_pad), jnp.float32)
    wf = wf.at[:, :action_size].set(params["wa"])
    wf = wf.at[:, action_size:action_size + 1].set(params["wc"])
    bf = jnp.zeros((1, head_pad), jnp.float32)
    bf = bf.at[:, :action_size].set(params["ba"])
    bf = bf.at[:, action_size:action_size + 1].set(params["bc"])

    return dict(
        w1=params["w1"].astype(compute_dtype),
        b1=params["b1"].astype(jnp.float32),
        w2=params["w2"].astype(compute_dtype),
        b2=params["b2"].astype(jnp.float32),
        wf=wf.astype(compute_dtype),
        bf=bf.astype(jnp.float32),
        state_size=state_size,
        hidden=hidden,
        action_size=action_size,
        head_pad=head_pad,
        compute_dtype=compute_dtype,
    )


def _choose_tile(B, block_b):
    """Pick (tb, b_pad, n_steps).  Even step count (>=2 whenever B allows) so the
    "parallel" batch axis shards across both v7x TensorCores; the cdiv-based split
    caps pad waste at <8 rows per step instead of up to ~2x."""
    steps = 2 * max(1, -(-B // (2 * block_b)))          # even number of grid steps
    tb = min(_round_up(-(-B // steps), 8), _round_up(block_b, 8))
    b_pad = _round_up(B, tb)
    return tb, b_pad, b_pad // tb


# -----------------------------------------------------------------------------
# Forward wrapper
# -----------------------------------------------------------------------------
def a2c_forward(state, prep, *, block_b=1024, out_dtype=jnp.float32,
                approx_recip=True):
    """state: (B, state_size) f32, prep: output of prepare_params.
    Returns (probs (B, A) in out_dtype, value (B, 1) f32)."""
    B, state_size = state.shape
    assert state_size == prep["state_size"]
    hidden = prep["hidden"]
    action_size = prep["action_size"]
    head_pad = prep["head_pad"]
    compute_dtype = prep["compute_dtype"]

    tb, b_pad, n_steps = _choose_tile(B, block_b)
    x = state if b_pad == B else jnp.pad(state, ((0, b_pad - B), (0, 0)))

    w_bytes = jnp.dtype(compute_dtype).itemsize
    out_bytes = jnp.dtype(out_dtype).itemsize
    cost = pl.CostEstimate(
        flops=2 * b_pad * (state_size * hidden + hidden * hidden + hidden * head_pad),
        transcendentals=b_pad * head_pad,
        bytes_accessed=(b_pad * state_size * state.dtype.itemsize
                        + (state_size * hidden + hidden * hidden + hidden * head_pad) * w_bytes
                        + (2 * hidden + head_pad) * 4
                        + b_pad * head_pad * out_bytes),
    )

    # Weights/biases are fetched once (constant index_map) -> single-buffered.
    resident = functools.partial(pl.BlockSpec, pipeline_mode=pl.Buffered(1))

    kernel = pl.pallas_call(
        functools.partial(a2c_kernel, action_size=action_size,
                          compute_dtype=compute_dtype, approx_recip=approx_recip),
        out_shape=jax.ShapeDtypeStruct((b_pad, head_pad), out_dtype),
        grid=(n_steps,),
        in_specs=[
            pl.BlockSpec((tb, state_size), lambda i: (i, 0)),      # x (pipelined)
            resident((state_size, hidden), lambda i: (0, 0)),      # w1 (resident)
            resident((1, hidden), lambda i: (0, 0)),               # b1
            resident((hidden, hidden), lambda i: (0, 0)),          # w2
            resident((1, hidden), lambda i: (0, 0)),               # b2
            resident((hidden, head_pad), lambda i: (0, 0)),        # fused head W
            resident((1, head_pad), lambda i: (0, 0)),             # fused head b
        ],
        out_specs=pl.BlockSpec((tb, head_pad), lambda i: (i, 0)),  # lane-dense slab
        compiler_params=pltpu.CompilerParams(
            dimension_semantics=("parallel",)),
        cost_estimate=cost,
    )
    out = kernel(x, prep["w1"], prep["b1"], prep["w2"], prep["b2"],
                 prep["wf"], prep["bf"])

    probs = out[:B, :action_size]
    value = out[:B, action_size:action_size + 1].astype(jnp.float32)
    return probs, value


# -----------------------------------------------------------------------------
# Synthetic params + pure-JAX reference
# -----------------------------------------------------------------------------
def init_params(key, state_size, action_size, hidden=128):
    """Deterministic synthetic init (PyTorch-Linear-like uniform bounds).
    Weights stored as (in_features, out_features), i.e. W.T vs nn.Linear."""
    ks = jax.random.split(key, 8)

    def lin(kw, kb, fan_in, fan_out):
        bound = 1.0 / jnp.sqrt(fan_in)
        w = jax.random.uniform(kw, (fan_in, fan_out), jnp.float32, -bound, bound)
        b = jax.random.uniform(kb, (1, fan_out), jnp.float32, -bound, bound)
        return w, b

    w1, b1 = lin(ks[0], ks[1], state_size, hidden)
    w2, b2 = lin(ks[2], ks[3], hidden, hidden)
    wa, ba = lin(ks[4], ks[5], hidden, action_size)
    wc, bc = lin(ks[6], ks[7], hidden, 1)
    return dict(w1=w1, b1=b1, w2=w2, b2=b2, wa=wa, ba=ba, wc=wc, bc=bc)


def a2c_forward_ref(state, p):
    h = jnp.maximum(state @ p["w1"] + p["b1"], 0.0)
    h = jnp.maximum(h @ p["w2"] + p["b2"], 0.0)
    probs = jax.nn.softmax(h @ p["wa"] + p["ba"], axis=-1)
    value = h @ p["wc"] + p["bc"]
    return probs, value


if __name__ == "__main__":
    key = jax.random.PRNGKey(0)
    k_params, k_state = jax.random.split(key)

    batch, state_size, action_size = 8, 16, 4
    params = init_params(k_params, state_size, action_size)
    state = jax.random.normal(k_state, (batch, state_size), jnp.float32)

    ref_probs, ref_value = a2c_forward_ref(state, params)

    # --- f32 matmuls, exact reciprocal, f32 output: tight tolerance vs reference ---
    prep_f32 = prepare_params(params, compute_dtype=jnp.float32)
    probs, value = a2c_forward(state, prep_f32, out_dtype=jnp.float32,
                               approx_recip=False)
    probs, value = jax.block_until_ready((probs, value))
    assert probs.shape == (batch, action_size)
    assert value.shape == (batch, 1)
    assert jnp.allclose(probs, ref_probs, atol=1e-5, rtol=1e-5)
    assert jnp.allclose(value, ref_value, atol=1e-5, rtol=1e-5)
    assert jnp.allclose(jnp.sum(probs, axis=-1), 1.0, atol=1e-5)

    # --- bf16 fast path (MXU-native on v5e/v6e/v7x), approx EUP reciprocal, bf16 slab ---
    prep_bf16 = prepare_params(params, compute_dtype=jnp.bfloat16)
    probs_bf, value_bf = a2c_forward(state, prep_bf16, out_dtype=jnp.bfloat16,
                                     approx_recip=True)
    probs_bf, value_bf = jax.block_until_ready((probs_bf, value_bf))
    probs_bf = probs_bf.astype(jnp.float32)
    assert jnp.all(jnp.isfinite(probs_bf)) and jnp.all(jnp.isfinite(value_bf))
    assert jnp.allclose(jnp.sum(probs_bf, axis=-1), 1.0, atol=1e-2)
    assert jnp.allclose(probs_bf, ref_probs, atol=1e-1, rtol=1e-1)
    assert jnp.allclose(value_bf, ref_value, atol=1e-1, rtol=1e-1)

    print("KERNEL_OK")
</pallas_src>

<mosaic_0001>
module attributes {stable_mosaic.version = 11 : i64} {
  func.func @a2c_kernel(%arg0: i32, %arg1: memref<8x16xf32, #tpu.memory_space<vmem>>, %arg2: memref<16x128xf32, #tpu.memory_space<vmem>>, %arg3: memref<1x128xf32, #tpu.memory_space<vmem>>, %arg4: memref<128x128xf32, #tpu.memory_space<vmem>>, %arg5: memref<1x128xf32, #tpu.memory_space<vmem>>, %arg6: memref<128x128xf32, #tpu.memory_space<vmem>>, %arg7: memref<1x128xf32, #tpu.memory_space<vmem>>, %arg8: memref<8x128xf32, #tpu.memory_space<vmem>>) attributes {dimension_semantics = [#tpu.dimension_semantics<parallel>], iteration_bounds = array<i64: 1>, scalar_prefetch = 0 : i64, scratch_operands = 0 : i64, tpu.core_type = #tpu.core_type<tc>, window_params = [{transform_indices = @transform_0, window_bounds = array<i64: 8, 16>}, {pipeline_mode = #tpu.pipeline_mode<synchronous>, transform_indices = @transform_1, window_bounds = array<i64: 16, 128>}, {pipeline_mode = #tpu.pipeline_mode<synchronous>, transform_indices = @transform_2, window_bounds = array<i64: 1, 128>}, {pipeline_mode = #tpu.pipeline_mode<synchronous>, transform_indices = @transform_3, window_bounds = array<i64: 128, 128>}, {pipeline_mode = #tpu.pipeline_mode<synchronous>, transform_indices = @transform_4, window_bounds = array<i64: 1, 128>}, {pipeline_mode = #tpu.pipeline_mode<synchronous>, transform_indices = @transform_5, window_bounds = array<i64: 128, 128>}, {pipeline_mode = #tpu.pipeline_mode<synchronous>, transform_indices = @transform_6, window_bounds = array<i64: 1, 128>}, {transform_indices = @transform_7, window_bounds = array<i64: 8, 128>}]} {
    %c0 = arith.constant 0 : index
    %c0_0 = arith.constant 0 : index
    %0 = vector.load %arg1[%c0, %c0_0] : memref<8x16xf32, #tpu.memory_space<vmem>>, vector<8x16xf32>
    %c0_1 = arith.constant 0 : index
    %c0_2 = arith.constant 0 : index
    %1 = vector.load %arg2[%c0_1, %c0_2] : memref<16x128xf32, #tpu.memory_space<vmem>>, vector<16x128xf32>
    %cst = arith.constant dense<0.000000e+00> : vector<8x128xf32>
    %2 = tpu.matmul %0, %1, %cst {dimension_numbers = #tpu.dot_dimension_numbers<[1], [0], [0], [1], [0, 0, 1, 1], [], []>} : vector<8x16xf32>, vector<16x128xf32>, vector<8x128xf32> -> vector<8x128xf32>
    %c0_3 = arith.constant 0 : index
    %c0_4 = arith.constant 0 : index
    %3 = vector.load %arg3[%c0_3, %c0_4] : memref<1x128xf32, #tpu.memory_space<vmem>>, vector<1x128xf32>
    %4 = vector.broadcast %3 : vector<1x128xf32> to vector<8x128xf32>
    %5 = arith.addf %2, %4 : vector<8x128xf32>
    %cst_5 = arith.constant 0.000000e+00 : f32
    %6 = vector.broadcast %cst_5 : f32 to vector<8x128xf32>
    %7 = arith.maximumf %5, %6 : vector<8x128xf32>
    %c0_6 = arith.constant 0 : index
    %c0_7 = arith.constant 0 : index
    %8 = vector.load %arg4[%c0_6, %c0_7] : memref<128x128xf32, #tpu.memory_space<vmem>>, vector<128x128xf32>
    %cst_8 = arith.constant dense<0.000000e+00> : vector<8x128xf32>
    %9 = tpu.matmul %7, %8, %cst_8 {dimension_numbers = #tpu.dot_dimension_numbers<[1], [0], [0], [1], [0, 0, 1, 1], [], []>} : vector<8x128xf32>, vector<128x128xf32>, vector<8x128xf32> -> vector<8x128xf32>
    %c0_9 = arith.constant 0 : index
    %c0_10 = arith.constant 0 : index
    %10 = vector.load %arg5[%c0_9, %c0_10] : memref<1x128xf32, #tpu.memory_space<vmem>>, vector<1x128xf32>
    %11 = vector.broadcast %10 : vector<1x128xf32> to vector<8x128xf32>
    %12 = arith.addf %9, %11 : vector<8x128xf32>
    %cst_11 = arith.constant 0.000000e+00 : f32
    %13 = vector.broadcast %cst_11 : f32 to vector<8x128xf32>
    %14 = arith.maximumf %12, %13 : vector<8x128xf32>
    %c0_12 = arith.constant 0 : index
    %c0_13 = arith.constant 0 : index
    %15 = vector.load %arg6[%c0_12, %c0_13] : memref<128x128xf32, #tpu.memory_space<vmem>>, vector<128x128xf32>
    %cst_14 = arith.constant dense<0.000000e+00> : vector<8x128xf32>
    %16 = tpu.matmul %14, %15, %cst_14 {dimension_numbers = #tpu.dot_dimension_numbers<[1], [0], [0], [1], [0, 0, 1, 1], [], []>} : vector<8x128xf32>, vector<128x128xf32>, vector<8x128xf32> -> vector<8x128xf32>
    %c0_15 = arith.constant 0 : index
    %c0_16 = arith.constant 0 : index
    %17 = vector.load %arg7[%c0_15, %c0_16] : memref<1x128xf32, #tpu.memory_space<vmem>>, vector<1x128xf32>
    %18 = vector.broadcast %17 : vector<1x128xf32> to vector<8x128xf32>
    %19 = arith.addf %16, %18 : vector<8x128xf32>
    %20 = tpu.iota {dimensions = array<i32: 1>} : vector<8x128xi32>
    %c4_i32 = arith.constant 4 : i32
    %21 = vector.broadcast %c4_i32 : i32 to vector<8x128xi32>
    %22 = arith.cmpi slt, %20, %21 : vector<8x128xi32>
    %cst_17 = arith.constant 0xFF800000 : f32
    %23 = vector.broadcast %cst_17 : f32 to vector<8x128xf32>
    %24 = arith.select %22, %19, %23 : vector<8x128xi1>, vector<8x128xf32>
    %cst_18 = arith.constant dense<0xFF800000> : vector<8xf32>
    %25 = vector.multi_reduction <maximumf>, %24, %cst_18 [1] : vector<8x128xf32> to vector<8xf32>
    %26 = vector.shape_cast %25 : vector<8xf32> to vector<8x1xf32>
    %27 = vector.broadcast %26 : vector<8x1xf32> to vector<8x128xf32>
    %28 = arith.subf %19, %27 : vector<8x128xf32>
    %29 = math.exp %28 : vector<8x128xf32>
    %cst_19 = arith.constant 0.000000e+00 : f32
    %30 = vector.broadcast %cst_19 : f32 to vector<8x128xf32>
    %31 = arith.select %22, %29, %30 : vector<8x128xi1>, vector<8x128xf32>
    %cst_20 = arith.constant dense<0.000000e+00> : vector<8xf32>
    %32 = vector.multi_reduction <add>, %31, %cst_20 [1] : vector<8x128xf32> to vector<8xf32>
    %33 = vector.shape_cast %32 : vector<8xf32> to vector<8x1xf32>
    %34 = tpu.reciprocal %33 : vector<8x1xf32> -> vector<8x1xf32>
    %35 = vector.broadcast %34 : vector<8x1xf32> to vector<8x128xf32>
    %36 = arith.mulf %31, %35 : vector<8x128xf32>
    %c4_i32_21 = arith.constant 4 : i32
    %37 = vector.broadcast %c4_i32_21 : i32 to vector<8x128xi32>
    %38 = arith.cmpi eq, %20, %37 : vector<8x128xi32>
    %39 = arith.select %38, %19, %36 : vector<8x128xi1>, vector<8x128xf32>
    %c0_22 = arith.constant 0 : index
    %c0_23 = arith.constant 0 : index
    %40 = vector.load %arg8[%c0_22, %c0_23] : memref<8x128xf32, #tpu.memory_space<vmem>>, vector<8x128xf32>
    tpu.vector_store %arg8[%c0_22, %c0_23], %39 {strides = array<i32>} : memref<8x128xf32, #tpu.memory_space<vmem>>, vector<8x128xf32>,
    return
  }
  func.func @transform_0(%arg0: i32) -> (i32, i32) {
    %c0_i32 = arith.constant 0 : i32
    %c0_i32_0 = arith.constant 0 : i32
    return %arg0, %c0_i32 : i32, i32
  }
  func.func @transform_1(%arg0: i32) -> (i32, i32) {
    %c0_i32 = arith.constant 0 : i32
    %c0_i32_0 = arith.constant 0 : i32
    %c0_i32_1 = arith.constant 0 : i32
    return %c0_i32, %c0_i32_0 : i32, i32
  }
  func.func @transform_2(%arg0: i32) -> (i32, i32) {
    %c0_i32 = arith.constant 0 : i32
    %c0_i32_0 = arith.constant 0 : i32
    %c0_i32_1 = arith.constant 0 : i32
    return %c0_i32, %c0_i32_0 : i32, i32
  }
  func.func @transform_3(%arg0: i32) -> (i32, i32) {
    %c0_i32 = arith.constant 0 : i32
    %c0_i32_0 = arith.constant 0 : i32
    %c0_i32_1 = arith.constant 0 : i32
    return %c0_i32, %c0_i32_0 : i32, i32
  }
  func.func @transform_4(%arg0: i32) -> (i32, i32) {
    %c0_i32 = arith.constant 0 : i32
    %c0_i32_0 = arith.constant 0 : i32
    %c0_i32_1 = arith.constant 0 : i32
    return %c0_i32, %c0_i32_0 : i32, i32
  }
  func.func @transform_5(%arg0: i32) -> (i32, i32) {
    %c0_i32 = arith.constant 0 : i32
    %c0_i32_0 = arith.constant 0 : i32
    %c0_i32_1 = arith.constant 0 : i32
    return %c0_i32, %c0_i32_0 : i32, i32
  }
  func.func @transform_6(%arg0: i32) -> (i32, i32) {
    %c0_i32 = arith.constant 0 : i32
    %c0_i32_0 = arith.constant 0 : i32
    %c0_i32_1 = arith.constant 0 : i32
    return %c0_i32, %c0_i32_0 : i32, i32
  }
  func.func @transform_7(%arg0: i32) -> (i32, i32) {
    %c0_i32 = arith.constant 0 : i32
    %c0_i32_0 = arith.constant 0 : i32
    return %arg0, %c0_i32 : i32, i32
  }
}

</mosaic_0001>

<llo_original>
// kernel: tpu_custom_call.1
$region0: #{tpu_custom_call.1}
  #allocation0 [shape = 'u32[]', space=smem, size = 0x4, offset = 0x4, fixed_abs, tag = 'smem constant byte address 0x4 - core index']
  #allocation1 [shape = 'u32[72,128]{1,0:T(1,128)}', space=vmem, size = 0x9000, scoped, tag = 'internal scratch']
  %s0 = inlined_call_operand.hbm [shape: f32[8,16], index: 0, kind: input, shape index: {}]
  %s1 = inlined_call_operand.hbm [shape: f32[16,128], index: 1, kind: input, shape index: {}]
  %s2 = inlined_call_operand.vmem [shape: f32[1,128], index: 2, kind: input, shape index: {}]
  %s3 = inlined_call_operand.hbm [shape: f32[128,128], index: 3, kind: input, shape index: {}]
  %s4 = inlined_call_operand.vmem [shape: f32[1,128], index: 4, kind: input, shape index: {}]
  %s5 = inlined_call_operand.hbm [shape: f32[128,128], index: 5, kind: input, shape index: {}]
  %s6 = inlined_call_operand.vmem [shape: f32[1,128], index: 6, kind: input, shape index: {}]
  %s7 = inlined_call_operand.hbm [shape: f32[8,128], index: 7, kind: output, shape index: {}]
  %s8 = sld [smem:[#allocation0]]
  $region54: #{tpu_custom_call.1} parent=0
    _
  %s10 = ssub.s32 1, %s8
  %s11 = scalar_select 0, %s10, %s8
  $region1: #{tpu_custom_call.1} parent=0
    #allocation2 [shape = 'u8[4096]{0}', space=vmem, size = 0x1000, scoped, tag = 'input window, operand 0, single buffered']
    #allocation3 [shape = 's32[1]{0}', space=sflag, size = 0x4, scoped, tag = 'scoped memory for tpu_custom_call.1']
    #allocation4 [shape = 's32[1]{0}', space=sflag, size = 0x4, scoped, tag = 'scoped memory for tpu_custom_call.1']
    #allocation5 [shape = 'u8[8192]{0}', space=vmem, size = 0x2000, scoped, tag = 'input window, operand 1, single buffered']
    #allocation6 [shape = 's32[1]{0}', space=sflag, size = 0x4, scoped, tag = 'scoped memory for tpu_custom_call.1']
    #allocation7 [shape = 'u8[65536]{0}', space=vmem, size = 0x10000, scoped, tag = 'input window, operand 3, single buffered']
    #allocation8 [shape = 'u8[65536]{0}', space=vmem, size = 0x10000, scoped, tag = 'input window, operand 5, single buffered']
    #allocation9 [shape = 's32[1]{0}', space=sflag, size = 0x4, scoped, tag = 'scoped memory for tpu_custom_call.1']
    #allocation10 [shape = 'u8[4096]{0}', space=vmem, size = 0x1000, scoped, tag = 'output window, operand 0, single buffered']
    %12 = vsyncpa [#allocation3], 0
    %13 = vsyncpa [#allocation6], 0
    %14 = vsyncpa [#allocation9], 0
    %15 = vsyncpa [#allocation4], 0
    // Predicated region
    $region2: #{tpu_custom_call.1} parent=1 // pred_check
      _
    $region3: #{tpu_custom_call.1} parent=1 // pred_check_branch
      %17 = sbr.rel (0) target = $region5
    $region4: #{tpu_custom_call.1} parent=1 // pred_region
      %19 = vsyncadd [#allocation3], 0
      %s21 = sshll.u32 %s0, 4
      %s22 = int_to_ptr.hbm [resolvable:$true] %s21
      %s23 = sshll.u32 [#allocation2], 4
      %s24 = int_to_ptr.vmem [resolvable:$true] %s23
      %26 = dma.hbm_to_vmem [thread:$0]  %s22, 128, %s24, [#allocation3]
    $region5: #{tpu_custom_call.1} parent=1 // pred_fallthru
      _
    // Predicated region
    $region6: #{tpu_custom_call.1} parent=1 // pred_check
      _
    $region7: #{tpu_custom_call.1} parent=1 // pred_check_branch
      %28 = sbr.rel (0) target = $region9
    $region8: #{tpu_custom_call.1} parent=1 // pred_region
      %30 = vsyncadd [#allocation6], 0
      %s31 = sshll.u32 %s1, 4
      %s32 = int_to_ptr.hbm [resolvable:$true] %s31
      %s33 = sshll.u32 [#allocation5], 4
      %s34 = int_to_ptr.vmem [resolvable:$true] %s33
      %39 = dma.hbm_to_vmem [thread:$0]  %s32, 256, %s34, [#allocation6], 128, 128, 8
    $region9: #{tpu_custom_call.1} parent=1 // pred_fallthru
      _
    // Predicated region
    $region10: #{tpu_custom_call.1} parent=1 // pred_check
      _
    $region11: #{tpu_custom_call.1} parent=1 // pred_check_branch
      %41 = sbr.rel (0) target = $region13
    $region12: #{tpu_custom_call.1} parent=1 // pred_region
      _
    $region13: #{tpu_custom_call.1} parent=1 // pred_fallthru
      _
    // Predicated region
    $region14: #{tpu_custom_call.1} parent=1 // pred_check
      _
    $region15: #{tpu_custom_call.1} parent=1 // pred_check_branch
      %43 = sbr.rel (0) target = $region17
    $region16: #{tpu_custom_call.1} parent=1 // pred_region
      %45 = vsyncadd [#allocation6], 0
      %s46 = sshll.u32 %s3, 4
      %s47 = int_to_ptr.hbm [resolvable:$true] %s46
      %s48 = sshll.u32 [#allocation7], 4
      %s49 = int_to_ptr.vmem [resolvable:$true] %s48
      %54 = dma.hbm_to_vmem [thread:$0]  %s47, 2048, %s49, [#allocation6], 128, 128, 8
    $region17: #{tpu_custom_call.1} parent=1 // pred_fallthru
      _
    // Predicated region
    $region18: #{tpu_custom_call.1} parent=1 // pred_check
      _
    $region19: #{tpu_custom_call.1} parent=1 // pred_check_branch
      %56 = sbr.rel (0) target = $region21
    $region20: #{tpu_custom_call.1} parent=1 // pred_region
      _
    $region21: #{tpu_custom_call.1} parent=1 // pred_fallthru
      _
    // Predicated region
    $region22: #{tpu_custom_call.1} parent=1 // pred_check
      _
    $region23: #{tpu_custom_call.1} parent=1 // pred_check_branch
      %58 = sbr.rel (0) target = $region25
    $region24: #{tpu_custom_call.1} parent=1 // pred_region
      %60 = vsyncadd [#allocation9], 0
      %s61 = sshll.u32 %s5, 4
      %s62 = int_to_ptr.hbm [resolvable:$true] %s61
      %s63 = sshll.u32 [#allocation8], 4
      %s64 = int_to_ptr.vmem [resolvable:$true] %s63
      %69 = dma.hbm_to_vmem [thread:$0]  %s62, 2048, %s64, [#allocation9], 128, 128, 8
    $region25: #{tpu_custom_call.1} parent=1 // pred_fallthru
      _
    // Predicated region
    $region26: #{tpu_custom_call.1} parent=1 // pred_check
      _
    $region27: #{tpu_custom_call.1} parent=1 // pred_check_branch
      %71 = sbr.rel (0) target = $region29
    $region28: #{tpu_custom_call.1} parent=1 // pred_region
      _
    $region29: #{tpu_custom_call.1} parent=1 // pred_fallthru
      _
    // Predicated region
    $region30: #{tpu_custom_call.1} parent=1 // pred_check
      _
    $region31: #{tpu_custom_call.1} parent=1 // pred_check_branch
      %73 = sbr.rel (0) target = $region33
    $region32: #{tpu_custom_call.1} parent=1 // pred_region
      %75 = dma.done [#allocation3], 128
    $region33: #{tpu_custom_call.1} parent=1 // pred_fallthru
      _
    // Predicated region
    $region34: #{tpu_custom_call.1} parent=1 // pred_check
      _
    $region35: #{tpu_custom_call.1} parent=1 // pred_check_branch
      %77 = sbr.rel (0) target = $region37
    $region36: #{tpu_custom_call.1} parent=1 // pred_region
      %79 = dma.done [#allocation6], 256
    $region37: #{tpu_custom_call.1} parent=1 // pred_fallthru
      _
    // Predicated region
    $region38: #{tpu_custom_call.1} parent=1 // pred_check
      _
    $region39: #{tpu_custom_call.1} parent=1 // pred_check_branch
      %81 = sbr.rel (0) target = $region41
    $region40: #{tpu_custom_call.1} parent=1 // pred_region
      %83 = dma.done [#allocation6], 2048
    $region41: #{tpu_custom_call.1} parent=1 // pred_fallthru
      _
    // Predicated region
    $region42: #{tpu_custom_call.1} parent=1 // pred_check
      _
    $region43: #{tpu_custom_call.1} parent=1 // pred_check_branch
      %85 = sbr.rel (0) target = $region45
    $region44: #{tpu_custom_call.1} parent=1 // pred_region
      %87 = dma.done [#allocation9], 2048
    $region45: #{tpu_custom_call.1} parent=1 // pred_fallthru
      _
    %v88 = vld [vmem:[#allocation2] sm:$0xff]
    %v89 = vld [vmem:[#allocation5] sm:$0xff]
    %v90 = vld [vmem:[#allocation5 + $0x8] sm:$0xff]
    %v91 = vld [vmem:[%s2] sm:$0x1]
    %v93 = vperm.slane %v91, 0
    %vm95 = vcmask 130048
    %v97 = vsel %vm95, %v88, 0
    %99 = vmatpush.msra.mxu0 0.0
    %100 = vmatpush.msra.mxu0 0.0
    %101 = vmatpush.msra.mxu0 0.0
    %102 = vmatpush.msra.mxu0 0.0
    %103 = vmatpush.msra.mxu0 0.0
    %104 = vmatpush.msra.mxu0 0.0
    %105 = vmatpush.msra.mxu0 0.0
    %106 = vmatpush.msra.mxu0 0.0
    %107 = vmatpush.msra.mxu0 0.0
    %108 = vmatpush.msra.mxu0 0.0
    %109 = vmatpush.msra.mxu0 0.0
    %110 = vmatpush.msra.mxu0 0.0
    %111 = vmatpush.msra.mxu0 0.0
    %112 = vmatpush.msra.mxu0 0.0
    %113 = vmatpush.msra.mxu0 %v90
    %114 = vmatpush.msra.mxu0 %v89
    %115 = vmatmul.f32.gmra.mxu0 %v97
    %v116 = vpop.f32.mrf.mxu0
    %v117 = vadd.f32 %v93, %v116
    %118 = vdwg.mxu0
    %v119 = vmax.f32 %v117, 0.0
    %v120 = vld [vmem:[#allocation7] sm:$0xff]
    %v121 = vld [vmem:[#allocation7 + $0x8] sm:$0xff]
    %v122 = vld [vmem:[#allocation7 + $0x10] sm:$0xff]
    %v123 = vld [vmem:[#allocation7 + $0x18] sm:$0xff]
    %v124 = vld [vmem:[#allocation7 + $0x20] sm:$0xff]
    %v125 = vld [vmem:[#allocation7 + $0x28] sm:$0xff]
    %v126 = vld [vmem:[#allocation7 + $0x30] sm:$0xff]
    %v127 = vld [vmem:[#allocation7 + $0x38] sm:$0xff]
    %v128 = vld [vmem:[#allocation7 + $0x40] sm:$0xff]
    %v129 = vld [vmem:[#allocation7 + $0x48] sm:$0xff]
    %v130 = vld [vmem:[#allocation7 + $0x50] sm:$0xff]
    %v131 = vld [vmem:[#allocation7 + $0x58] sm:$0xff]
    %v132 = vld [vmem:[#allocation7 + $0x60] sm:$0xff]
    %v133 = vld [vmem:[#allocation7 + $0x68] sm:$0xff]
    %v134 = vld [vmem:[#allocation7 + $0x70] sm:$0xff]
    %v135 = vld [vmem:[#allocation7 + $0x78] sm:$0xff]
    %v136 = vld [vmem:[%s4] sm:$0x1]
    %v138 = vperm.slane %v136, 0
    %140 = vmatpush.msra.mxu0 %v135
    %141 = vmatpush.msra.mxu0 %v134
    %142 = vmatpush.msra.mxu0 %v133
    %143 = vmatpush.msra.mxu0 %v132
    %144 = vmatpush.msra.mxu0 %v131
    %145 = vmatpush.msra.mxu0 %v130
    %146 = vmatpush.msra.mxu0 %v129
    %147 = vmatpush.msra.mxu0 %v128
    %148 = vmatpush.msra.mxu0 %v127
    %149 = vmatpush.msra.mxu0 %v126
    %150 = vmatpush.msra.mxu0 %v125
    %151 = vmatpush.msra.mxu0 %v124
    %152 = vmatpush.msra.mxu0 %v123
    %153 = vmatpush.msra.mxu0 %v122
    %154 = vmatpush.msra.mxu0 %v121
    %155 = vmatpush.msra.mxu0 %v120
    %156 = vmatmul.f32.gmra.mxu0 %v119
    %v157 = vpop.f32.mrf.mxu0
    %v158 = vadd.f32 %v138, %v157
    %159 = vdwg.mxu0
    %v160 = vmax.f32 %v158, 0.0
    %v161 = vld [vmem:[#allocation8] sm:$0xff]
    %v162 = vld [vmem:[#allocation8 + $0x8] sm:$0xff]
    %v163 = vld [vmem:[#allocation8 + $0x10] sm:$0xff]
    %v164 = vld [vmem:[#allocation8 + $0x18] sm:$0xff]
    %v165 = vld [vmem:[#allocation8 + $0x20] sm:$0xff]
    %v166 = vld [vmem:[#allocation8 + $0x28] sm:$0xff]
    %v167 = vld [vmem:[#allocation8 + $0x30] sm:$0xff]
    %v168 = vld [vmem:[#allocation8 + $0x38] sm:$0xff]
    %v169 = vld [vmem:[#allocation8 + $0x40] sm:$0xff]
    %v170 = vld [vmem:[#allocation8 + $0x48] sm:$0xff]
    %v171 = vld [vmem:[#allocation8 + $0x50] sm:$0xff]
    %v172 = vld [vmem:[#allocation8 + $0x58] sm:$0xff]
    %v173 = vld [vmem:[#allocation8 + $0x60] sm:$0xff]
    %v174 = vld [vmem:[#allocation8 + $0x68] sm:$0xff]
    %v175 = vld [vmem:[#allocation8 + $0x70] sm:$0xff]
    %v176 = vld [vmem:[#allocation8 + $0x78] sm:$0xff]
    %v177 = vld [vmem:[%s6] sm:$0x1]
    %v179 = vperm.slane %v177, 0
    %181 = vmatpush.msra.mxu0 %v176
    %182 = vmatpush.msra.mxu0 %v175
    %183 = vmatpush.msra.mxu0 %v174
    %184 = vmatpush.msra.mxu0 %v173
    %185 = vmatpush.msra.mxu0 %v172
    %186 = vmatpush.msra.mxu0 %v171
    %187 = vmatpush.msra.mxu0 %v170
    %188 = vmatpush.msra.mxu0 %v169
    %189 = vmatpush.msra.mxu0 %v168
    %190 = vmatpush.msra.mxu0 %v167
    %191 = vmatpush.msra.mxu0 %v166
    %192 = vmatpush.msra.mxu0 %v165
    %193 = vmatpush.msra.mxu0 %v164
    %194 = vmatpush.msra.mxu0 %v163
    %195 = vmatpush.msra.mxu0 %v162
    %196 = vmatpush.msra.mxu0 %v161
    %197 = vmatmul.f32.gmra.mxu0 %v160
    %v198 = vpop.f32.mrf.mxu0
    %v199 = vadd.f32 %v179, %v198
    %200 = vdwg.mxu0
    %v201 = vlaneseq
    %v202 = vand.u32 %v201, 127
    %vm203 = vcmp.lt.s32.totalorder %v202, 4
    %v204 = vsel %vm203, %v199, -inf
    %205 = vmax.xlane.f32.xlu0 %v204
    %v206 = vpop.xlane.xlu0 %205
    %v207 = vsub.f32 %v199, %v206
    %v208 = vmul.f32 %v207, 1.442695
    %v209 = vpow.pop %v208
    %v210 = vsel %vm203, %v209, 0.0
    %211 = vadd.xlane.f32.xlu0 %v210
    %v212 = vpop.xlane.xlu0 %211
    %v213 = vrcp.pop %v212
    %v214 = vmul.f32 %v212, %v213
    %v215 = vsub.f32 1.0, %v214
    %v216 = vmul.f32 %v213, %v215
    %v217 = vadd.f32 %v213, %v216
    %vm218 = vweird.f32 %v212
    %vm219 = vweird.f32 %v213
    %vm220 = vmor %vm218, %vm219
    %v221 = vsel %vm220, %v213, %v217
    %v222 = vand.u32 2147483647, %v212
    %vm223 = vcmp.eq.f32.partialorder %v222, 8.507059e+37
    %v224 = vand.u32 %v212, 2147483648
    %v225 = vor.u32 1.1754944e-38, %v224
    %v226 = vsel %vm223, %v225, %v221
    %v227 = vmul.f32 %v210, %v226
    %vm228 = vcmp.eq.s32.totalorder %v202, 4
    %v229 = vsel %vm228, %v199, %v227
    %230 = vst [vmem:[#allocation10] sm:$0xff] %v229
    // Predicated region
    $region46: #{tpu_custom_call.1} parent=1 // pred_check
      _
    $region47: #{tpu_custom_call.1} parent=1 // pred_check_branch
      %232 = sbr.rel (0) target = $region49
    $region48: #{tpu_custom_call.1} parent=1 // pred_region
      %234 = vsyncadd [#allocation4], 0
      %s236 = sshll.u32 [#allocation10], 4
      %s237 = int_to_ptr.vmem [resolvable:$true] %s236
      %s238 = sshll.u32 %s7, 4
      %s239 = int_to_ptr.hbm [resolvable:$true] %s238
      %241 = dma.vmem_to_hbm [thread:$0]  %s237, 128, %s239, [#allocation4]
    $region49: #{tpu_custom_call.1} parent=1 // pred_fallthru
      _
    // Predicated region
    $region50: #{tpu_custom_call.1} parent=1 // pred_check
      _
    $region51: #{tpu_custom_call.1} parent=1 // pred_check_branch
      %243 = sbr.rel (0) target = $region53
    $region52: #{tpu_custom_call.1} parent=1 // pred_region
      %245 = dma.done [#allocation4], 128
    $region53: #{tpu_custom_call.1} parent=1 // pred_fallthru
      _
    %246 = vsyncpa [#allocation3], 1
    %247 = vsyncpa [#allocation6], 1
    %248 = vsyncpa [#allocation9], 1
    %249 = vsyncpa [#allocation4], 1

</llo_original>
